<compile_context>
chip_gen: v7x
topology: tpu7x:2x2x1
jax: 0.10.0
libtpu: 0.0.40
codegen_flags: <defaults>
</compile_context>

<pallas_src>
import math

import numpy as np
import jax
import jax.numpy as jnp
from jax.experimental import pallas as pl
from jax.experimental.pallas import tpu as pltpu


# ----------------------------------------------------------------------------
# Kernels
# ----------------------------------------------------------------------------
def _make_precond_in_kernel(m):
    m_minus_1 = float(m) - 1.0

    def kernel(x_ref, sigma_ref, u_ref, xin_ref, cnoise_ref):
        sigma = sigma_ref[...]                              # (B, 1) f32
        # c_in = 1 / sqrt(sigma^2 + 1)  (exact parity with the reference)
        c_in = 1.0 / jnp.sqrt(sigma * sigma + 1.0)
        xin_ref[...] = (x_ref[...] * c_in).astype(xin_ref.dtype)

        # round_sigma(sigma, return_index=True): 1-D cdist == |sigma - u_j|,
        # argmin over the (lane-padded) u table; padded lanes hold 1e30 so they
        # can never win.  First-minimal-index tie-break matches torch.argmin.
        d = jnp.abs(sigma - u_ref[...])                     # (B, U_pad)
        d_min = jnp.min(d, axis=-1, keepdims=True)          # (B, 1)
        lane = jax.lax.broadcasted_iota(jnp.int32, d.shape, 1).astype(jnp.float32)
        big = float(d.shape[-1])
        idx = jnp.min(jnp.where(d == d_min, lane, big),
                      axis=-1, keepdims=True)               # (B, 1) f32
        cnoise_ref[...] = m_minus_1 - idx                   # c_noise = M-1-index

    return kernel


def _precond_out_kernel(x_ref, sigma_ref, fx_ref, out_ref):
    # D_x = c_skip * x + c_out * F_x[:, :C]  with c_skip = 1, c_out = -sigma
    out_ref[...] = (x_ref[...] - sigma_ref[...] * fx_ref[...]).astype(out_ref.dtype)


# ----------------------------------------------------------------------------
# Wrapper (the iDDPMPrecond.forward equivalent)
# ----------------------------------------------------------------------------
def iddpm_precond_forward(x, sigma, u, model_fn, *, img_channels, M=1000):
    """x: (B, C, H, W) f32; sigma: (B,) or scalar; u: (M+1,) buffer from __init__.

    model_fn: callable (x_in (B,C,H,W) f32, c_noise (B,) f32) -> (B, 2C, H, W)
    """
    B, C, H, W = x.shape
    assert C == img_channels
    n = C * H * W
    assert n % 128 == 0, "flattened feature dim must stay lane-dense"

    x32 = x.astype(jnp.float32)
    x2d = x32.reshape(B, n)
    sigma_b = jnp.broadcast_to(sigma.astype(jnp.float32).reshape(-1), (B,))
    sigma2d = sigma_b.reshape(B, 1)

    # Pad u to a lane-dense multiple of 128 with a sentinel that never wins argmin.
    U = u.shape[0]
    U_pad = ((U + 127) // 128) * 128
    u_pad = jnp.full((1, U_pad), 1e30, jnp.float32).at[0, :U].set(u.astype(jnp.float32))

    vmem = pl.BlockSpec(memory_space=pltpu.MemorySpace.VMEM)

    cost_in = pl.CostEstimate(
        flops=3 * B * n + 4 * B * U_pad,
        transcendentals=B,
        bytes_accessed=4 * (2 * B * n + U_pad + 2 * B),
    )
    x_in2d, c_noise = pl.pallas_call(
        _make_precond_in_kernel(M),
        out_shape=(jax.ShapeDtypeStruct((B, n), jnp.float32),
                   jax.ShapeDtypeStruct((B, 1), jnp.float32)),
        in_specs=[vmem, vmem, vmem],
        out_specs=(vmem, vmem),
        cost_estimate=cost_in,
    )(x2d, sigma2d, u_pad)

    # TODO(synk): the wrapped DhariwalUNet (self.model) has no single-kernel Pallas
    # equivalent here; it is left as an external JAX callable.
    F_x = model_fn(x_in2d.reshape(B, C, H, W), c_noise.reshape(B))
    fx2d = F_x[:, :img_channels].astype(jnp.float32).reshape(B, n)

    cost_out = pl.CostEstimate(
        flops=2 * B * n,
        transcendentals=0,
        bytes_accessed=4 * (3 * B * n + B),
    )
    d_x2d = pl.pallas_call(
        _precond_out_kernel,
        out_shape=jax.ShapeDtypeStruct((B, n), jnp.float32),
        in_specs=[vmem, vmem, vmem],
        out_specs=vmem,
        cost_estimate=cost_out,
    )(x2d, sigma2d, fx2d)

    return d_x2d.reshape(B, C, H, W)


# ----------------------------------------------------------------------------
# Buffers / reference / stand-in model
# ----------------------------------------------------------------------------
def build_u_table(M=1000, C_1=0.001, C_2=0.008):
    """The `u` buffer computed in iDDPMPrecond.__init__ (host-side, once)."""
    j = np.arange(M + 1, dtype=np.float64)
    alpha_bar = np.sin(0.5 * np.pi * j / M / (C_2 + 1)) ** 2
    u = np.zeros(M + 1, dtype=np.float64)
    for jj in range(M, 0, -1):
        ratio = max(alpha_bar[jj - 1] / alpha_bar[jj], C_1)
        u[jj - 1] = math.sqrt((u[jj] ** 2 + 1.0) / ratio - 1.0)
    return jnp.asarray(u, dtype=jnp.float32)


def toy_model(x_in, c_noise):
    # Deterministic pure-JAX stand-in for DhariwalUNet:
    # (B, C, H, W), (B,) -> (B, 2C, H, W).  Only used to exercise the wrapper.
    B = x_in.shape[0]
    t = (c_noise / 1000.0).reshape(B, 1, 1, 1)
    eps = jnp.tanh(x_in + t)
    var = 0.5 * x_in - t
    return jnp.concatenate([eps, var], axis=1)


def reference_forward(x, sigma, u, model_fn, *, img_channels, M=1000):
    # Pure-JAX mirror of iDDPMPrecond.forward (f32 path).
    x = x.astype(jnp.float32)
    sigma_f = sigma.astype(jnp.float32).reshape(-1)
    sigma_r = sigma_f.reshape(-1, 1, 1, 1)
    c_skip = 1.0
    c_out = -sigma_r
    c_in = 1.0 / jnp.sqrt(sigma_r ** 2 + 1.0)
    # round_sigma(sigma, return_index=True): nearest u entry (1-D cdist == |diff|)
    d = jnp.abs(sigma_f.reshape(-1, 1) - u.reshape(1, -1))
    index = jnp.argmin(d, axis=1)
    c_noise = (M - 1 - index).astype(jnp.float32)
    F_x = model_fn(c_in * x, c_noise)
    return c_skip * x + c_out * F_x[:, :img_channels].astype(jnp.float32)


# ----------------------------------------------------------------------------
if __name__ == "__main__":
    img_resolution = 16
    img_channels = 4
    M = 1000
    B = 2

    u = build_u_table(M=M)

    key = jax.random.PRNGKey(0)
    kx, ks = jax.random.split(key)
    x = jax.random.normal(kx, (B, img_channels, img_resolution, img_resolution),
                          jnp.float32)
    sigma = jax.random.uniform(ks, (B,), jnp.float32, 0.05, 20.0)

    out = iddpm_precond_forward(x, sigma, u, toy_model,
                                img_channels=img_channels, M=M)
    out = jax.block_until_ready(out)

    ref = reference_forward(x, sigma, u, toy_model,
                            img_channels=img_channels, M=M)
    assert out.shape == x.shape
    assert jnp.allclose(out, ref, atol=1e-4, rtol=1e-4), "mismatch vs reference"

    print("KERNEL_OK")
</pallas_src>

<mosaic_0001>
module attributes {stable_mosaic.version = 11 : i64} {
  func.func @kernel(%arg0: memref<2x1024xf32, #tpu.memory_space<vmem>>, %arg1: memref<2x1xf32, #tpu.memory_space<vmem>>, %arg2: memref<1x1024xf32, #tpu.memory_space<vmem>>, %arg3: memref<2x1024xf32, #tpu.memory_space<vmem>>, %arg4: memref<2x1xf32, #tpu.memory_space<vmem>>) attributes {dimension_semantics = [], scalar_prefetch = 0 : i64, scratch_operands = 0 : i64, tpu.core_type = #tpu.core_type<tc>} {
    %c0 = arith.constant 0 : index
    %c0_0 = arith.constant 0 : index
    %0 = vector.load %arg1[%c0, %c0_0] : memref<2x1xf32, #tpu.memory_space<vmem>>, vector<2x1xf32>
    %1 = arith.mulf %0, %0 : vector<2x1xf32>
    %cst = arith.constant 1.000000e+00 : f32
    %2 = vector.broadcast %cst : f32 to vector<2x1xf32>
    %3 = arith.addf %1, %2 : vector<2x1xf32>
    %4 = math.sqrt %3 : vector<2x1xf32>
    %cst_1 = arith.constant 1.000000e+00 : f32
    %5 = vector.broadcast %cst_1 : f32 to vector<2x1xf32>
    %6 = arith.divf %5, %4 : vector<2x1xf32>
    %c0_2 = arith.constant 0 : index
    %c0_3 = arith.constant 0 : index
    %7 = vector.load %arg0[%c0_2, %c0_3] : memref<2x1024xf32, #tpu.memory_space<vmem>>, vector<2x1024xf32>
    %8 = vector.broadcast %6 : vector<2x1xf32> to vector<2x1024xf32>
    %9 = arith.mulf %7, %8 : vector<2x1024xf32>
    %c0_4 = arith.constant 0 : index
    %c0_5 = arith.constant 0 : index
    %10 = vector.load %arg3[%c0_4, %c0_5] : memref<2x1024xf32, #tpu.memory_space<vmem>>, vector<2x1024xf32>
    tpu.vector_store %arg3[%c0_4, %c0_5], %9 {strides = array<i32>} : memref<2x1024xf32, #tpu.memory_space<vmem>>, vector<2x1024xf32>,
    %c0_6 = arith.constant 0 : index
    %c0_7 = arith.constant 0 : index
    %11 = vector.load %arg2[%c0_6, %c0_7] : memref<1x1024xf32, #tpu.memory_space<vmem>>, vector<1x1024xf32>
    %12 = vector.broadcast %0 : vector<2x1xf32> to vector<2x1024xf32>
    %13 = vector.broadcast %11 : vector<1x1024xf32> to vector<2x1024xf32>
    %14 = arith.subf %12, %13 : vector<2x1024xf32>
    %15 = math.absf %14 : vector<2x1024xf32>
    %cst_8 = arith.constant dense<0x7F800000> : vector<2xf32>
    %16 = vector.multi_reduction <minimumf>, %15, %cst_8 [1] : vector<2x1024xf32> to vector<2xf32>
    %17 = vector.shape_cast %16 : vector<2xf32> to vector<2x1xf32>
    %18 = tpu.iota {dimensions = array<i32: 1>} : vector<2x1024xi32>
    %19 = arith.sitofp %18 : vector<2x1024xi32> to vector<2x1024xf32>
    %20 = vector.broadcast %17 : vector<2x1xf32> to vector<2x1024xf32>
    %21 = arith.cmpf oeq, %15, %20 : vector<2x1024xf32>
    %cst_9 = arith.constant 1.024000e+03 : f32
    %22 = vector.broadcast %cst_9 : f32 to vector<2x1024xf32>
    %23 = arith.select %21, %19, %22 : vector<2x1024xi1>, vector<2x1024xf32>
    %cst_10 = arith.constant dense<0x7F800000> : vector<2xf32>
    %24 = vector.multi_reduction <minimumf>, %23, %cst_10 [1] : vector<2x1024xf32> to vector<2xf32>
    %25 = vector.shape_cast %24 : vector<2xf32> to vector<2x1xf32>
    %cst_11 = arith.constant 9.990000e+02 : f32
    %26 = vector.broadcast %cst_11 : f32 to vector<2x1xf32>
    %27 = arith.subf %26, %25 : vector<2x1xf32>
    %c0_12 = arith.constant 0 : index
    %c0_13 = arith.constant 0 : index
    %28 = vector.load %arg4[%c0_12, %c0_13] : memref<2x1xf32, #tpu.memory_space<vmem>>, vector<2x1xf32>
    tpu.vector_store %arg4[%c0_12, %c0_13], %27 {strides = array<i32>} : memref<2x1xf32, #tpu.memory_space<vmem>>, vector<2x1xf32>,
    return
  }
}

</mosaic_0001>

<llo_original>
// kernel: tpu_custom_call.1
$region0: #{tpu_custom_call.1}
  #allocation0 [shape = 'u32[]', space=smem, size = 0x4, offset = 0x4, fixed_abs, tag = 'smem constant byte address 0x4 - core index']
  #allocation1 [shape = 'u32[144,128]{1,0:T(1,128)}', space=vmem, size = 0x12000, scoped, tag = 'internal scratch']
  %s0 = inlined_call_operand.hbm [shape: f32[2,1024], index: 0, kind: input, shape index: {}]
  %s1 = inlined_call_operand.vmem [shape: f32[2,1], index: 1, kind: input, shape index: {}]
  %s2 = inlined_call_operand.vmem [shape: f32[1,1024], index: 2, kind: input, shape index: {}]
  %s3 = inlined_call_operand.hbm [shape: f32[2,1024], index: 3, kind: output, shape index: {0}]
  %s4 = inlined_call_operand.vmem [shape: f32[2,1], index: 4, kind: output, shape index: {1}]
  %5 = xla_tuple %s3, %s4
  %s6 = sld [smem:[#allocation0]]
  $region34: #{tpu_custom_call.1} parent=0
    _
  %s8 = ssub.s32 1, %s6
  %s9 = scalar_select 0, %s8, %s6
  $region1: #{tpu_custom_call.1} parent=0
    #allocation2 [shape = 'u8[8192]{0}', space=vmem, size = 0x2000, scoped, tag = 'input window, operand 0, single buffered']
    #allocation3 [shape = 's32[1]{0}', space=sflag, size = 0x4, scoped, tag = 'scoped memory for tpu_custom_call.1']
    #allocation4 [shape = 's32[1]{0}', space=sflag, size = 0x4, scoped, tag = 'scoped memory for tpu_custom_call.1']
    #allocation5 [shape = 'u8[8192]{0}', space=vmem, size = 0x2000, scoped, tag = 'output window, operand 0, single buffered']
    %10 = vsyncpa [#allocation3], 0
    %11 = vsyncpa [#allocation4], 0
    // Predicated region
    $region2: #{tpu_custom_call.1} parent=1 // pred_check
      _
    $region3: #{tpu_custom_call.1} parent=1 // pred_check_branch
      %13 = sbr.rel (0) target = $region5
    $region4: #{tpu_custom_call.1} parent=1 // pred_region
      %s15 = ssub.s32 256, 256
      %16 = vsyncadd [#allocation3], %s15
      %s18 = sshll.u32 [#allocation2], 4
      %s19 = int_to_ptr.vmem [resolvable:$true] %s18
      %21 = dma.hbm_to_vmem [thread:$0]  %s0, 256, %s19, [#allocation3]
    $region5: #{tpu_custom_call.1} parent=1 // pred_fallthru
      _
    // Predicated region
    $region6: #{tpu_custom_call.1} parent=1 // pred_check
      _
    $region7: #{tpu_custom_call.1} parent=1 // pred_check_branch
      %23 = sbr.rel (0) target = $region9
    $region8: #{tpu_custom_call.1} parent=1 // pred_region
      _
    $region9: #{tpu_custom_call.1} parent=1 // pred_fallthru
      _
    // Predicated region
    $region10: #{tpu_custom_call.1} parent=1 // pred_check
      _
    $region11: #{tpu_custom_call.1} parent=1 // pred_check_branch
      %25 = sbr.rel (0) target = $region13
    $region12: #{tpu_custom_call.1} parent=1 // pred_region
      _
    $region13: #{tpu_custom_call.1} parent=1 // pred_fallthru
      _
    // Predicated region
    $region14: #{tpu_custom_call.1} parent=1 // pred_check
      _
    $region15: #{tpu_custom_call.1} parent=1 // pred_check_branch
      %27 = sbr.rel (0) target = $region17
    $region16: #{tpu_custom_call.1} parent=1 // pred_region
      %28 = dma.done [#allocation3], 256
    $region17: #{tpu_custom_call.1} parent=1 // pred_fallthru
      _
    %v29 = vld [vmem:[%s1] sm:$0x3]
    %v30 = vmul.f32 %v29, %v29
    %v31 = vadd.f32 %v30, 1.0
    %v32 = vrsqrt.pop %v31
    %v33 = vmul.f32 %v31, %v32
    %vm34 = vcmp.eq.f32.partialorder %v31, inf
    %v35 = vsel %vm34, %v31, %v33
    %vm36 = vcmp.eq.f32.partialorder %v31, 0.0
    %v37 = vand.u32 %v31, 2147483648
    %v38 = vsel %vm36, %v37, %v35
    %v39 = vrcp.pop %v38
    %v40 = vmul.f32 1.0, %v39
    %v41 = vld [vmem:[#allocation2] sm:$0xff]
    %v42 = vld [vmem:[#allocation2 + $0x8] sm:$0xff]
    %44 = vset.pattern.permute.xlu0 0
    %45 = vperm.xlu0 %44, %v40
    %v46 = vpop.permute.xlu0 %45
    %v48 = vunpack.c.l.s4 269488144
    %v49 = vunpack.c.0.s8 %v48
    %v50 = vlaneseq
    %v51 = vshrl.u32 %v50, 7
    %v52 = vsub.s32 %v49, %v51
    %v53 = vrot.slane %v46, %v52
    %v55 = vmul.f32 %v41, %v53
    %v56 = vmul.f32 %v42, %v53
    %57 = vst [vmem:[#allocation5] sm:$0xff] %v55
    %58 = vst [vmem:[#allocation5 + $0x8] sm:$0xff] %v56
    %v59 = vld [vmem:[%s2] sm:$0xff]
    %61 = vset.pattern.permute.xlu0 0
    %62 = vperm.xlu0 %61, %v29
    %v63 = vpop.permute.xlu0 %62
    %v66 = vlaneseq
    %v67 = vshrl.u32 %v66, 7
    %v68 = vsub.s32 0, %v67
    %v69 = vrot.slane %v59, %v68
    %v70 = vlaneseq
    %v71 = vshrl.u32 %v70, 7
    %v72 = vsub.s32 1, %v71
    %v73 = vrot.slane %v59, %v72
    %v74 = vlaneseq
    %v75 = vshrl.u32 %v74, 7
    %v76 = vsub.s32 2, %v75
    %v77 = vrot.slane %v59, %v76
    %v78 = vlaneseq
    %v79 = vshrl.u32 %v78, 7
    %v80 = vsub.s32 3, %v79
    %v81 = vrot.slane %v59, %v80
    %v82 = vlaneseq
    %v83 = vshrl.u32 %v82, 7
    %v84 = vsub.s32 4, %v83
    %v85 = vrot.slane %v59, %v84
    %v86 = vlaneseq
    %v87 = vshrl.u32 %v86, 7
    %v88 = vsub.s32 5, %v87
    %v89 = vrot.slane %v59, %v88
    %v90 = vlaneseq
    %v91 = vshrl.u32 %v90, 7
    %v92 = vsub.s32 6, %v91
    %v93 = vrot.slane %v59, %v92
    %v94 = vlaneseq
    %v95 = vshrl.u32 %v94, 7
    %v96 = vsub.s32 7, %v95
    %v97 = vrot.slane %v59, %v96
    %v106 = vsub.f32 %v63, %v69
    %v107 = vsub.f32 %v63, %v73
    %v108 = vsub.f32 %v63, %v77
    %v109 = vsub.f32 %v63, %v81
    %v110 = vsub.f32 %v63, %v85
    %v111 = vsub.f32 %v63, %v89
    %v112 = vsub.f32 %v63, %v93
    %v113 = vsub.f32 %v63, %v97
    %v114 = vand.u32 2147483647, %v106
    %v115 = vand.u32 2147483647, %v107
    %v116 = vand.u32 2147483647, %v108
    %v117 = vand.u32 2147483647, %v109
    %v118 = vand.u32 2147483647, %v110
    %v119 = vand.u32 2147483647, %v111
    %v120 = vand.u32 2147483647, %v112
    %v121 = vand.u32 2147483647, %v113
    %vm122 = vcmask 1041408
    %v123 = vsel %vm122, %v114, inf
    %v124 = vsel %vm122, %v115, inf
    %v125 = vsel %vm122, %v116, inf
    %v126 = vsel %vm122, %v117, inf
    %v127 = vsel %vm122, %v118, inf
    %v128 = vmin.f32 %v123, %v127
    %v129 = vsel %vm122, %v119, inf
    %v130 = vmin.f32 %v124, %v129
    %v131 = vsel %vm122, %v120, inf
    %v132 = vmin.f32 %v125, %v131
    %v133 = vsel %vm122, %v121, inf
    %v134 = vmin.f32 %v126, %v133
    %v135 = vmin.f32 %v128, %v130
    %v136 = vmin.f32 %v132, %v134
    %v137 = vmin.f32 %v135, %v136
    %138 = vmin.xlane.f32.xlu0 %v137
    %v139 = vpop.xlane.xlu0 %138
    %v140 = vlaneseq
    %v141 = vand.u32 %v140, 127
    %v142 = vadd.s32 %v141, 128
    %v143 = vadd.s32 %v141, 256
    %v144 = vadd.s32 %v141, 384
    %v145 = vadd.s32 %v141, 512
    %v146 = vadd.s32 %v141, 640
    %v147 = vadd.s32 %v141, 768
    %v148 = vadd.s32 %v141, 896
    %v149 = vcvt.s32.f32 %v141
    %v150 = vcvt.s32.f32 %v142
    %v151 = vcvt.s32.f32 %v143
    %v152 = vcvt.s32.f32 %v144
    %v153 = vcvt.s32.f32 %v145
    %v154 = vcvt.s32.f32 %v146
    %v155 = vcvt.s32.f32 %v147
    %v156 = vcvt.s32.f32 %v148
    %vm157 = vcmp.eq.f32.partialorder %v114, %v139
    %vm158 = vcmp.eq.f32.partialorder %v115, %v139
    %vm159 = vcmp.eq.f32.partialorder %v116, %v139
    %vm160 = vcmp.eq.f32.partialorder %v117, %v139
    %vm161 = vcmp.eq.f32.partialorder %v118, %v139
    %vm162 = vcmp.eq.f32.partialorder %v119, %v139
    %vm163 = vcmp.eq.f32.partialorder %v120, %v139
    %vm164 = vcmp.eq.f32.partialorder %v121, %v139
    %v165 = vsel %vm157, %v149, 1024.0
    %v166 = vsel %vm158, %v150, 1024.0
    %v167 = vsel %vm159, %v151, 1024.0
    %v168 = vsel %vm160, %v152, 1024.0
    %v169 = vsel %vm161, %v153, 1024.0
    %v170 = vsel %vm162, %v154, 1024.0
    %v171 = vsel %vm163, %v155, 1024.0
    %v172 = vsel %vm164, %v156, 1024.0
    %v173 = vsel %vm122, %v165, inf
    %v174 = vsel %vm122, %v166, inf
    %v175 = vsel %vm122, %v167, inf
    %v176 = vsel %vm122, %v168, inf
    %v177 = vsel %vm122, %v169, inf
    %v178 = vmin.f32 %v173, %v177
    %v179 = vsel %vm122, %v170, inf
    %v180 = vmin.f32 %v174, %v179
    %v181 = vsel %vm122, %v171, inf
    %v182 = vmin.f32 %v175, %v181
    %v183 = vsel %vm122, %v172, inf
    %v184 = vmin.f32 %v176, %v183
    %v185 = vmin.f32 %v178, %v180
    %v186 = vmin.f32 %v182, %v184
    %v187 = vmin.f32 %v185, %v186
    %188 = vmin.xlane.f32.xlu0 %v187
    %v189 = vpop.xlane.xlu0 %188
    %v190 = vsub.f32 999.0, %v189
    %vm191 = vcmask 1024
    %192 = vst.msk [vmem:[%s4] sm:$0x3] %vm191, %v190
    // Predicated region
    $region18: #{tpu_custom_call.1} parent=1 // pred_check
      _
    $region19: #{tpu_custom_call.1} parent=1 // pred_check_branch
      %194 = sbr.rel (0) target = $region21
    $region20: #{tpu_custom_call.1} parent=1 // pred_region
      %s196 = ssub.s32 256, 256
      %197 = vsyncadd [#allocation4], %s196
      %s199 = sshll.u32 [#allocation5], 4
      %s200 = int_to_ptr.vmem [resolvable:$true] %s199
      %202 = dma.vmem_to_hbm [thread:$0]  %s200, 256, %s3, [#allocation4]
    $region21: #{tpu_custom_call.1} parent=1 // pred_fallthru
      _
    // Predicated region
    $region22: #{tpu_custom_call.1} parent=1 // pred_check
      _
    $region23: #{tpu_custom_call.1} parent=1 // pred_check_branch
      %204 = sbr.rel (0) target = $region25
    $region24: #{tpu_custom_call.1} parent=1 // pred_region
      _
    $region25: #{tpu_custom_call.1} parent=1 // pred_fallthru
      _
    // Predicated region
    $region26: #{tpu_custom_call.1} parent=1 // pred_check
      _
    $region27: #{tpu_custom_call.1} parent=1 // pred_check_branch
      %206 = sbr.rel (0) target = $region29
    $region28: #{tpu_custom_call.1} parent=1 // pred_region
      %207 = dma.done [#allocation4], 256
    $region29: #{tpu_custom_call.1} parent=1 // pred_fallthru
      _
    // Predicated region
    $region30: #{tpu_custom_call.1} parent=1 // pred_check
      _
    $region31: #{tpu_custom_call.1} parent=1 // pred_check_branch
      %209 = sbr.rel (0) target = $region33
    $region32: #{tpu_custom_call.1} parent=1 // pred_region
      _
    $region33: #{tpu_custom_call.1} parent=1 // pred_fallthru
      _
    %210 = vsyncpa [#allocation3], 1
    %211 = vsyncpa [#allocation4], 1

</llo_original>
